<compile_context>
chip_gen: v7x
topology: tpu7x:2x2x1
jax: 0.10.0
libtpu: 0.0.40
codegen_flags: <defaults>
</compile_context>

<pallas_src>
import jax
import jax.numpy as jnp
from jax.experimental import pallas as pl
from jax.experimental.pallas import tpu as pltpu


def smcl_kernel(x_ref, w1_ref, b1_ref, w2_ref, b2_ref, w3_ref, b3_ref, hyp_ref):
    # x_ref: [1, Bt] (batch on lanes)
    # fc1 (in_features == 1): outer product on the VPU, no MXU involved.
    h = jnp.maximum(w1_ref[...] * x_ref[...] + b1_ref[...], 0.0)        # [H, Bt]
    # fc2 + ReLU (MXU).
    h = jnp.dot(w2_ref[...], h, preferred_element_type=jnp.float32)     # [H, Bt]
    h = jnp.maximum(h + b2_ref[...], 0.0)
    # All K hypothesis heads fused into one matmul: [K*2, H] @ [H, Bt].
    out = jnp.dot(w3_ref[...], h, preferred_element_type=jnp.float32)   # [K*2, Bt]
    hyp_ref[...] = out + b3_ref[...]


def smcl_forward(x, params, num_hypothesis, *, block_b=4096):
    """x: [B, 1] float32. Returns (hyp [B, K, 2], confs [B, K, 1])."""
    w1, b1, w2, b2, w3, b3 = params          # PyTorch layout: w [out, in], b [out, 1]
    B = x.shape[0]
    K = num_hypothesis
    H = w1.shape[0]

    LANE = 128
    block_b = max(LANE, (block_b // LANE) * LANE)
    # Pad batch to the lane width, pick the batch tile, pad to a whole grid.
    B_pad = ((B + LANE - 1) // LANE) * LANE
    Bt = min(block_b, B_pad)
    B_pad = ((B_pad + Bt - 1) // Bt) * Bt
    grid = (B_pad // Bt,)

    # Batch on the lane axis; zero-pad the tail tile (sliced off afterwards).
    x_t = x.reshape(1, B)
    if B_pad != B:
        x_t = jnp.pad(x_t, ((0, 0), (0, B_pad - B)))

    # Explicit VMEM budget: resident weights + double-buffered x/hyp tiles +
    # live [H, Bt] activations, with headroom; safe on v7x (64 MiB physical).
    w_bytes = 4 * (H * (H + 2 * K + 3) + 2 * K)
    io_bytes = 4 * Bt * (8 + 2 * K) * 2           # double-buffered x + hyp tiles
    act_bytes = 4 * Bt * H * 3
    vmem_limit = max(w_bytes + io_bytes + act_bytes + (4 << 20), 16 << 20)
    vmem_limit = min(vmem_limit, 32 << 20)

    flops = 2 * B_pad * H * (1 + H + 2 * K)
    bytes_accessed = 4 * (B_pad * (1 + 2 * K) + H * (H + 2 * K + 3) + 2 * K)

    hyp_t = pl.pallas_call(
        smcl_kernel,
        out_shape=jax.ShapeDtypeStruct((2 * K, B_pad), jnp.float32),
        grid=grid,
        in_specs=[
            pl.BlockSpec((1, Bt), lambda i: (0, i)),           # x tile (streamed)
            pl.BlockSpec((H, 1), lambda i: (0, 0)),            # w1 (VMEM-resident)
            pl.BlockSpec((H, 1), lambda i: (0, 0)),            # b1
            pl.BlockSpec((H, H), lambda i: (0, 0)),            # w2
            pl.BlockSpec((H, 1), lambda i: (0, 0)),            # b2
            pl.BlockSpec((2 * K, H), lambda i: (0, 0)),        # w3 (K heads fused)
            pl.BlockSpec((2 * K, 1), lambda i: (0, 0)),        # b3
        ],
        out_specs=pl.BlockSpec((2 * K, Bt), lambda i: (0, i)),  # lane-dense output
        compiler_params=pltpu.CompilerParams(
            dimension_semantics=("parallel",),
            vmem_limit_bytes=vmem_limit,
        ),
        cost_estimate=pl.CostEstimate(
            flops=flops, transcendentals=0, bytes_accessed=bytes_accessed),
    )(x_t, w1, b1, w2, b2, w3, b3)

    hyp = hyp_t[:, :B].T.reshape(B, K, 2)
    # Uniform confidences (classical sMCL): constant, produced outside the kernel.
    confs = jnp.ones((B, K, 1), jnp.float32)
    return hyp, confs


def init_params(key, num_hypothesis, num_hidden_units):
    """Deterministic init mimicking PyTorch nn.Linear default:
    U(-1/sqrt(fan_in), 1/sqrt(fan_in)). Weights kept in PyTorch [out, in] layout;
    biases stored as [out, 1]."""
    H = num_hidden_units
    K = num_hypothesis
    ks = jax.random.split(key, 6)

    def uni(k, shape, fan_in):
        bound = 1.0 / jnp.sqrt(jnp.float32(fan_in))
        return jax.random.uniform(k, shape, jnp.float32, -bound, bound)

    w1 = uni(ks[0], (H, 1), 1)          # fc1: out=H, in=1
    b1 = uni(ks[1], (H, 1), 1)
    w2 = uni(ks[2], (H, H), H)          # fc2: out=H, in=H
    b2 = uni(ks[3], (H, 1), H)
    w3 = uni(ks[4], (2 * K, H), H)      # K heads row-concatenated: out=K*2, in=H
    b3 = uni(ks[5], (2 * K, 1), H)
    return (w1, b1, w2, b2, w3, b3)


def smcl_reference(x, params, num_hypothesis):
    """Pure-JAX reference for a correctness check."""
    w1, b1, w2, b2, w3, b3 = params
    h = jnp.maximum(x @ w1.T + b1.T, 0.0)
    h = jnp.maximum(h @ w2.T + b2.T, 0.0)
    out = h @ w3.T + b3.T
    hyp = out.reshape(x.shape[0], num_hypothesis, 2)
    confs = jnp.ones((x.shape[0], num_hypothesis, 1), jnp.float32)
    return hyp, confs


if __name__ == "__main__":
    B = 200               # batch (not a multiple of 128: exercises tail padding)
    H = 32                # num_hidden_units (small for the test)
    K = 4                 # num_hypothesis

    key = jax.random.PRNGKey(0)
    k_x, k_p = jax.random.split(key)
    x = jax.random.normal(k_x, (B, 1), dtype=jnp.float32)
    params = init_params(k_p, K, H)

    # block_b=128 so the test exercises a multi-step batch grid (2 tiles).
    hyp, confs = smcl_forward(x, params, K, block_b=128)
    jax.block_until_ready((hyp, confs))

    # sanity checks against pure-JAX reference
    hyp_ref, confs_ref = smcl_reference(x, params, K)
    assert hyp.shape == (B, K, 2)
    assert confs.shape == (B, K, 1)
    assert jnp.allclose(hyp, hyp_ref, atol=1e-5, rtol=1e-5)
    assert jnp.allclose(confs, confs_ref)

    print("KERNEL_OK")
</pallas_src>

<mosaic_0001>
module attributes {stable_mosaic.version = 11 : i64} {
  func.func @smcl_kernel(%arg0: i32, %arg1: memref<1x128xf32, #tpu.memory_space<vmem>>, %arg2: memref<32x1xf32, #tpu.memory_space<vmem>>, %arg3: memref<32x1xf32, #tpu.memory_space<vmem>>, %arg4: memref<32x32xf32, #tpu.memory_space<vmem>>, %arg5: memref<32x1xf32, #tpu.memory_space<vmem>>, %arg6: memref<8x32xf32, #tpu.memory_space<vmem>>, %arg7: memref<8x1xf32, #tpu.memory_space<vmem>>, %arg8: memref<8x128xf32, #tpu.memory_space<vmem>>) attributes {dimension_semantics = [#tpu.dimension_semantics<parallel>], iteration_bounds = array<i64: 2>, scalar_prefetch = 0 : i64, scratch_operands = 0 : i64, tpu.core_type = #tpu.core_type<tc>, window_params = [{transform_indices = @transform_0, window_bounds = array<i64: 1, 128>}, {pipeline_mode = #tpu.pipeline_mode<synchronous>, transform_indices = @transform_1, window_bounds = array<i64: 32, 1>}, {pipeline_mode = #tpu.pipeline_mode<synchronous>, transform_indices = @transform_2, window_bounds = array<i64: 32, 1>}, {pipeline_mode = #tpu.pipeline_mode<synchronous>, transform_indices = @transform_3, window_bounds = array<i64: 32, 32>}, {pipeline_mode = #tpu.pipeline_mode<synchronous>, transform_indices = @transform_4, window_bounds = array<i64: 32, 1>}, {pipeline_mode = #tpu.pipeline_mode<synchronous>, transform_indices = @transform_5, window_bounds = array<i64: 8, 32>}, {pipeline_mode = #tpu.pipeline_mode<synchronous>, transform_indices = @transform_6, window_bounds = array<i64: 8, 1>}, {transform_indices = @transform_7, window_bounds = array<i64: 8, 128>}]} {
    %c0 = arith.constant 0 : index
    %c0_0 = arith.constant 0 : index
    %0 = vector.load %arg2[%c0, %c0_0] : memref<32x1xf32, #tpu.memory_space<vmem>>, vector<32x1xf32>
    %c0_1 = arith.constant 0 : index
    %c0_2 = arith.constant 0 : index
    %1 = vector.load %arg1[%c0_1, %c0_2] : memref<1x128xf32, #tpu.memory_space<vmem>>, vector<1x128xf32>
    %2 = vector.broadcast %0 : vector<32x1xf32> to vector<32x128xf32>
    %3 = vector.broadcast %1 : vector<1x128xf32> to vector<32x128xf32>
    %4 = arith.mulf %2, %3 : vector<32x128xf32>
    %c0_3 = arith.constant 0 : index
    %c0_4 = arith.constant 0 : index
    %5 = vector.load %arg3[%c0_3, %c0_4] : memref<32x1xf32, #tpu.memory_space<vmem>>, vector<32x1xf32>
    %6 = vector.broadcast %5 : vector<32x1xf32> to vector<32x128xf32>
    %7 = arith.addf %4, %6 : vector<32x128xf32>
    %cst = arith.constant 0.000000e+00 : f32
    %8 = vector.broadcast %cst : f32 to vector<32x128xf32>
    %9 = arith.maximumf %7, %8 : vector<32x128xf32>
    %c0_5 = arith.constant 0 : index
    %c0_6 = arith.constant 0 : index
    %10 = vector.load %arg4[%c0_5, %c0_6] : memref<32x32xf32, #tpu.memory_space<vmem>>, vector<32x32xf32>
    %cst_7 = arith.constant dense<0.000000e+00> : vector<32x128xf32>
    %11 = tpu.matmul %10, %9, %cst_7 {dimension_numbers = #tpu.dot_dimension_numbers<[1], [0], [0], [1], [0, 0, 1, 1], [], []>} : vector<32x32xf32>, vector<32x128xf32>, vector<32x128xf32> -> vector<32x128xf32>
    %c0_8 = arith.constant 0 : index
    %c0_9 = arith.constant 0 : index
    %12 = vector.load %arg5[%c0_8, %c0_9] : memref<32x1xf32, #tpu.memory_space<vmem>>, vector<32x1xf32>
    %13 = vector.broadcast %12 : vector<32x1xf32> to vector<32x128xf32>
    %14 = arith.addf %11, %13 : vector<32x128xf32>
    %cst_10 = arith.constant 0.000000e+00 : f32
    %15 = vector.broadcast %cst_10 : f32 to vector<32x128xf32>
    %16 = arith.maximumf %14, %15 : vector<32x128xf32>
    %c0_11 = arith.constant 0 : index
    %c0_12 = arith.constant 0 : index
    %17 = vector.load %arg6[%c0_11, %c0_12] : memref<8x32xf32, #tpu.memory_space<vmem>>, vector<8x32xf32>
    %cst_13 = arith.constant dense<0.000000e+00> : vector<8x128xf32>
    %18 = tpu.matmul %17, %16, %cst_13 {dimension_numbers = #tpu.dot_dimension_numbers<[1], [0], [0], [1], [0, 0, 1, 1], [], []>} : vector<8x32xf32>, vector<32x128xf32>, vector<8x128xf32> -> vector<8x128xf32>
    %c0_14 = arith.constant 0 : index
    %c0_15 = arith.constant 0 : index
    %19 = vector.load %arg7[%c0_14, %c0_15] : memref<8x1xf32, #tpu.memory_space<vmem>>, vector<8x1xf32>
    %20 = vector.broadcast %19 : vector<8x1xf32> to vector<8x128xf32>
    %21 = arith.addf %18, %20 : vector<8x128xf32>
    %c0_16 = arith.constant 0 : index
    %c0_17 = arith.constant 0 : index
    %22 = vector.load %arg8[%c0_16, %c0_17] : memref<8x128xf32, #tpu.memory_space<vmem>>, vector<8x128xf32>
    tpu.vector_store %arg8[%c0_16, %c0_17], %21 {strides = array<i32>} : memref<8x128xf32, #tpu.memory_space<vmem>>, vector<8x128xf32>,
    return
  }
  func.func @transform_0(%arg0: i32) -> (i32, i32) {
    %c0_i32 = arith.constant 0 : i32
    %c0_i32_0 = arith.constant 0 : i32
    return %c0_i32, %arg0 : i32, i32
  }
  func.func @transform_1(%arg0: i32) -> (i32, i32) {
    %c0_i32 = arith.constant 0 : i32
    %c0_i32_0 = arith.constant 0 : i32
    %c0_i32_1 = arith.constant 0 : i32
    return %c0_i32, %c0_i32_0 : i32, i32
  }
  func.func @transform_2(%arg0: i32) -> (i32, i32) {
    %c0_i32 = arith.constant 0 : i32
    %c0_i32_0 = arith.constant 0 : i32
    %c0_i32_1 = arith.constant 0 : i32
    return %c0_i32, %c0_i32_0 : i32, i32
  }
  func.func @transform_3(%arg0: i32) -> (i32, i32) {
    %c0_i32 = arith.constant 0 : i32
    %c0_i32_0 = arith.constant 0 : i32
    %c0_i32_1 = arith.constant 0 : i32
    return %c0_i32, %c0_i32_0 : i32, i32
  }
  func.func @transform_4(%arg0: i32) -> (i32, i32) {
    %c0_i32 = arith.constant 0 : i32
    %c0_i32_0 = arith.constant 0 : i32
    %c0_i32_1 = arith.constant 0 : i32
    return %c0_i32, %c0_i32_0 : i32, i32
  }
  func.func @transform_5(%arg0: i32) -> (i32, i32) {
    %c0_i32 = arith.constant 0 : i32
    %c0_i32_0 = arith.constant 0 : i32
    %c0_i32_1 = arith.constant 0 : i32
    return %c0_i32, %c0_i32_0 : i32, i32
  }
  func.func @transform_6(%arg0: i32) -> (i32, i32) {
    %c0_i32 = arith.constant 0 : i32
    %c0_i32_0 = arith.constant 0 : i32
    %c0_i32_1 = arith.constant 0 : i32
    return %c0_i32, %c0_i32_0 : i32, i32
  }
  func.func @transform_7(%arg0: i32) -> (i32, i32) {
    %c0_i32 = arith.constant 0 : i32
    %c0_i32_0 = arith.constant 0 : i32
    return %c0_i32, %arg0 : i32, i32
  }
}

</mosaic_0001>

<llo_original>
// kernel: tpu_custom_call.1
$region0: #{tpu_custom_call.1}
  #allocation0 [shape = 'u32[]', space=smem, size = 0x4, offset = 0x4, fixed_abs, tag = 'smem constant byte address 0x4 - core index']
  #allocation1 [shape = 'u32[144,128]{1,0:T(1,128)}', space=vmem, size = 0x12000, scoped, tag = 'internal scratch']
  %s0 = inlined_call_operand.vmem [shape: f32[1,256], index: 0, kind: input, shape index: {}]
  %s1 = inlined_call_operand.vmem [shape: f32[32,1], index: 1, kind: input, shape index: {}]
  %s2 = inlined_call_operand.vmem [shape: f32[32,1], index: 2, kind: input, shape index: {}]
  %s3 = inlined_call_operand.vmem [shape: f32[32,32], index: 3, kind: input, shape index: {}]
  %s4 = inlined_call_operand.vmem [shape: f32[32,1], index: 4, kind: input, shape index: {}]
  %s5 = inlined_call_operand.vmem [shape: f32[8,32], index: 5, kind: input, shape index: {}]
  %s6 = inlined_call_operand.vmem [shape: f32[8,1], index: 6, kind: input, shape index: {}]
  %s7 = inlined_call_operand.hbm [shape: f32[8,256], index: 7, kind: output, shape index: {}]
  %s8 = sld [smem:[#allocation0]]
  $region61: #{tpu_custom_call.1} parent=0
    _
  %s10 = ssub.s32 1, %s8
  %s11 = scalar_select 0, %s10, %s8
  $region1: #{tpu_custom_call.1} parent=0
    #allocation2 [shape = 'u8[8192]{0}', space=vmem, size = 0x2000, scoped, tag = 'output window, operand 0']
    #allocation3 [shape = 's32[2]{0}', space=sflag, size = 0x8, scoped, tag = 'scoped memory for tpu_custom_call.1']
    %12 = vsyncpa [#allocation3], 0
    %s13 = scalar_lea.sflag [#allocation3], 1
    %14 = vsyncpa %s13, 0
    loop: start=0, step=1, limit=4
    $region2: #{tpu_custom_call.1} parent=1 // loop_pre_header
      _
    $region3: #{tpu_custom_call.1} parent=1 // loop_header
      %s16 = sphi 0, %s20
      %p17 = scmp.ge.s32.totalorder %s16, 4
      %s26 = sphi 0, %s28
      %s29 = sphi 0, %s26
      %s30 = sphi 0, %s29
      %s46 = sphi 0, %s30
      %s50 = sphi 0, %s50
      %s52 = sphi 0, %s50
      %s53 = sphi 0, %s52
      %s67 = sphi 0, %s53
      %s71 = sphi 0, %s71
      %s73 = sphi 0, %s71
      %s74 = sphi 0, %s73
      %s88 = sphi 0, %s74
      %s92 = sphi 0, %s92
      %s94 = sphi 0, %s92
      %s95 = sphi 0, %s94
      %s109 = sphi 0, %s95
      %s113 = sphi 0, %s113
      %s115 = sphi 0, %s113
      %s116 = sphi 0, %s115
      %s130 = sphi 0, %s116
      %s134 = sphi 0, %s134
      %s136 = sphi 0, %s134
      %s137 = sphi 0, %s136
      %s151 = sphi 0, %s137
      %s155 = sphi 0, %s155
      %s157 = sphi 0, %s155
      %s158 = sphi 0, %s157
      %s172 = sphi 0, %s158
      %s178 = sphi 0, %s180
      %s181 = sphi 0, %s178
      %s182 = sphi 0, %s181
      %s198 = sphi 0, %s182
    $region4: #{tpu_custom_call.1} parent=1 // loop_header_branch
      %19 = sbr.rel (%p17) target = $region8
    $region5: #{tpu_custom_call.1} parent=1 // loop_body
      %s21 = ssub.s32 %s16, 1
      %s22 = ssub.s32 %s16, 2
      %s23 = sadd.s32 %s16, 1
      %s24 = ssub.s32 %s16, %s23
      %p25 = scmp.eq.s32.totalorder %s24, 0
      %s27 = sadd.s32 %s26, 1
      %s28 = scalar_select %p25, %s26, %s27
      %p31 = pneg %p25
      %p32 = scmp.eq.s32.totalorder %s16, 1
      %p33 = por %p31, %p32
      %p34 = scmp.ne.s32.totalorder %s26, %s29
      %p35 = scmp.eq.s32.totalorder %s16, 0
      %p36 = por %p34, %p35
      %p37 = scmp.ne.s32.totalorder %s26, %s29
      %p38 = scmp.eq.s32.totalorder %s21, 1
      %p39 = por %p37, %p38
      %p40 = scmp.ne.s32.totalorder %s29, %s30
      %p41 = scmp.eq.s32.totalorder %s21, 0
      %p42 = por %p40, %p41
      %p43 = scmp.ne.s32.totalorder %s29, %s30
      %p44 = scmp.eq.s32.totalorder %s22, 1
      %p45 = por %p43, %p44
      %p47 = scmp.ne.s32.totalorder %s30, %s46
      %p48 = scmp.eq.s32.totalorder %s22, 0
      %p49 = por %p47, %p48
      %s51 = sadd.s32 %s50, 1
      %p54 = scmp.eq.s32.totalorder %s16, 1
      %p55 = scmp.ne.s32.totalorder %s50, %s52
      %p56 = scmp.eq.s32.totalorder %s16, 0
      %p57 = por %p55, %p56
      %p58 = scmp.ne.s32.totalorder %s50, %s52
      %p59 = scmp.eq.s32.totalorder %s21, 1
      %p60 = por %p58, %p59
      %p61 = scmp.ne.s32.totalorder %s52, %s53
      %p62 = scmp.eq.s32.totalorder %s21, 0
      %p63 = por %p61, %p62
      %p64 = scmp.ne.s32.totalorder %s52, %s53
      %p65 = scmp.eq.s32.totalorder %s22, 1
      %p66 = por %p64, %p65
      %p68 = scmp.ne.s32.totalorder %s53, %s67
      %p69 = scmp.eq.s32.totalorder %s22, 0
      %p70 = por %p68, %p69
      %s72 = sadd.s32 %s71, 1
      %p75 = scmp.eq.s32.totalorder %s16, 1
      %p76 = scmp.ne.s32.totalorder %s71, %s73
      %p77 = scmp.eq.s32.totalorder %s16, 0
      %p78 = por %p76, %p77
      %p79 = scmp.ne.s32.totalorder %s71, %s73
      %p80 = scmp.eq.s32.totalorder %s21, 1
      %p81 = por %p79, %p80
      %p82 = scmp.ne.s32.totalorder %s73, %s74
      %p83 = scmp.eq.s32.totalorder %s21, 0
      %p84 = por %p82, %p83
      %p85 = scmp.ne.s32.totalorder %s73, %s74
      %p86 = scmp.eq.s32.totalorder %s22, 1
      %p87 = por %p85, %p86
      %p89 = scmp.ne.s32.totalorder %s74, %s88
      %p90 = scmp.eq.s32.totalorder %s22, 0
      %p91 = por %p89, %p90
      %s93 = sadd.s32 %s92, 1
      %p96 = scmp.eq.s32.totalorder %s16, 1
      %p97 = scmp.ne.s32.totalorder %s92, %s94
      %p98 = scmp.eq.s32.totalorder %s16, 0
      %p99 = por %p97, %p98
      %p100 = scmp.ne.s32.totalorder %s92, %s94
      %p101 = scmp.eq.s32.totalorder %s21, 1
      %p102 = por %p100, %p101
      %p103 = scmp.ne.s32.totalorder %s94, %s95
      %p104 = scmp.eq.s32.totalorder %s21, 0
      %p105 = por %p103, %p104
      %p106 = scmp.ne.s32.totalorder %s94, %s95
      %p107 = scmp.eq.s32.totalorder %s22, 1
      %p108 = por %p106, %p107
      %p110 = scmp.ne.s32.totalorder %s95, %s109
      %p111 = scmp.eq.s32.totalorder %s22, 0
      %p112 = por %p110, %p111
      %s114 = sadd.s32 %s113, 1
      %p117 = scmp.eq.s32.totalorder %s16, 1
      %p118 = scmp.ne.s32.totalorder %s113, %s115
      %p119 = scmp.eq.s32.totalorder %s16, 0
      %p120 = por %p118, %p119
      %p121 = scmp.ne.s32.totalorder %s113, %s115
      %p122 = scmp.eq.s32.totalorder %s21, 1
      %p123 = por %p121, %p122
      %p124 = scmp.ne.s32.totalorder %s115, %s116
      %p125 = scmp.eq.s32.totalorder %s21, 0
      %p126 = por %p124, %p125
      %p127 = scmp.ne.s32.totalorder %s115, %s116
      %p128 = scmp.eq.s32.totalorder %s22, 1
      %p129 = por %p127, %p128
      %p131 = scmp.ne.s32.totalorder %s116, %s130
      %p132 = scmp.eq.s32.totalorder %s22, 0
      %p133 = por %p131, %p132
      %s135 = sadd.s32 %s134, 1
      %p138 = scmp.eq.s32.totalorder %s16, 1
      %p139 = scmp.ne.s32.totalorder %s134, %s136
      %p140 = scmp.eq.s32.totalorder %s16, 0
      %p141 = por %p139, %p140
      %p142 = scmp.ne.s32.totalorder %s134, %s136
      %p143 = scmp.eq.s32.totalorder %s21, 1
      %p144 = por %p142, %p143
      %p145 = scmp.ne.s32.totalorder %s136, %s137
      %p146 = scmp.eq.s32.totalorder %s21, 0
      %p147 = por %p145, %p146
      %p148 = scmp.ne.s32.totalorder %s136, %s137
      %p149 = scmp.eq.s32.totalorder %s22, 1
      %p150 = por %p148, %p149
      %p152 = scmp.ne.s32.totalorder %s137, %s151
      %p153 = scmp.eq.s32.totalorder %s22, 0
      %p154 = por %p152, %p153
      %s156 = sadd.s32 %s155, 1
      %p159 = scmp.eq.s32.totalorder %s16, 1
      %p160 = scmp.ne.s32.totalorder %s155, %s157
      %p161 = scmp.eq.s32.totalorder %s16, 0
      %p162 = por %p160, %p161
      %p163 = scmp.ne.s32.totalorder %s155, %s157
      %p164 = scmp.eq.s32.totalorder %s21, 1
      %p165 = por %p163, %p164
      %p166 = scmp.ne.s32.totalorder %s157, %s158
      %p167 = scmp.eq.s32.totalorder %s21, 0
      %p168 = por %p166, %p167
      %p169 = scmp.ne.s32.totalorder %s157, %s158
      %p170 = scmp.eq.s32.totalorder %s22, 1
      %p171 = por %p169, %p170
      %p173 = scmp.ne.s32.totalorder %s158, %s172
      %p174 = scmp.eq.s32.totalorder %s22, 0
      %p175 = por %p173, %p174
      %s176 = ssub.s32 %s16, %s23
      %p177 = scmp.eq.s32.totalorder %s176, 0
      %s179 = sadd.s32 %s178, 1
      %s180 = scalar_select %p177, %s178, %s179
      %p183 = pneg %p177
      %p184 = scmp.eq.s32.totalorder %s16, 1
      %p185 = por %p183, %p184
      %p186 = scmp.ne.s32.totalorder %s178, %s181
      %p187 = scmp.eq.s32.totalorder %s16, 0
      %p188 = por %p186, %p187
      %p189 = scmp.ne.s32.totalorder %s178, %s181
      %p190 = scmp.eq.s32.totalorder %s21, 1
      %p191 = por %p189, %p190
      %p192 = scmp.ne.s32.totalorder %s181, %s182
      %p193 = scmp.eq.s32.totalorder %s21, 0
      %p194 = por %p192, %p193
      %p195 = scmp.ne.s32.totalorder %s181, %s182
      %p196 = scmp.eq.s32.totalorder %s22, 1
      %p197 = por %p195, %p196
      %p199 = scmp.ne.s32.totalorder %s182, %s198
      %p200 = scmp.eq.s32.totalorder %s22, 0
      %p201 = por %p199, %p200
      %p202 = scmp.le.s32.totalorder 1, %s16
      %p203 = scmp.lt.s32.totalorder %s16, 3
      %p204 = pnand %p202, %p203
      %p205 = pneg %p204
      // Predicated region
      $region9: #{tpu_custom_call.1} parent=5 // pred_check
        _
      $region10: #{tpu_custom_call.1} parent=5 // pred_check_branch
        %207 = sbr.rel (%p204) target = $region12
      $region11: #{tpu_custom_call.1} parent=5 // pred_region
        %s208 = ssub.s32 %s16, 1
        // Predicated region
        $region13: #{tpu_custom_call.1} parent=11 // pred_check
          %p209 = pneg %p63
        $region14: #{tpu_custom_call.1} parent=11 // pred_check_branch
          %211 = sbr.rel (%p209) target = $region16
        $region15: #{tpu_custom_call.1} parent=11 // pred_region
          _
        $region16: #{tpu_custom_call.1} parent=11 // pred_fallthru
          _
        // Predicated region
        $region17: #{tpu_custom_call.1} parent=11 // pred_check
          %p212 = pneg %p84
        $region18: #{tpu_custom_call.1} parent=11 // pred_check_branch
          %214 = sbr.rel (%p212) target = $region20
        $region19: #{tpu_custom_call.1} parent=11 // pred_region
          _
        $region20: #{tpu_custom_call.1} parent=11 // pred_fallthru
          _
        // Predicated region
        $region21: #{tpu_custom_call.1} parent=11 // pred_check
          %p215 = pneg %p105
        $region22: #{tpu_custom_call.1} parent=11 // pred_check_branch
          %217 = sbr.rel (%p215) target = $region24
        $region23: #{tpu_custom_call.1} parent=11 // pred_region
          _
        $region24: #{tpu_custom_call.1} parent=11 // pred_fallthru
          _
        // Predicated region
        $region25: #{tpu_custom_call.1} parent=11 // pred_check
          %p218 = pneg %p126
        $region26: #{tpu_custom_call.1} parent=11 // pred_check_branch
          %220 = sbr.rel (%p218) target = $region28
        $region27: #{tpu_custom_call.1} parent=11 // pred_region
          _
        $region28: #{tpu_custom_call.1} parent=11 // pred_fallthru
          _
        // Predicated region
        $region29: #{tpu_custom_call.1} parent=11 // pred_check
          %p221 = pneg %p147
        $region30: #{tpu_custom_call.1} parent=11 // pred_check_branch
          %223 = sbr.rel (%p221) target = $region32
        $region31: #{tpu_custom_call.1} parent=11 // pred_region
          _
        $region32: #{tpu_custom_call.1} parent=11 // pred_fallthru
          _
        // Predicated region
        $region33: #{tpu_custom_call.1} parent=11 // pred_check
          %p224 = pneg %p168
        $region34: #{tpu_custom_call.1} parent=11 // pred_check_branch
          %226 = sbr.rel (%p224) target = $region36
        $region35: #{tpu_custom_call.1} parent=11 // pred_region
          _
        $region36: #{tpu_custom_call.1} parent=11 // pred_fallthru
          _
      $region12: #{tpu_custom_call.1} parent=5 // pred_fallthru
        _
      %p227 = scmp.lt.s32.totalorder %s16, 2
      // Predicated region
      $region37: #{tpu_custom_call.1} parent=5 // pred_check
        %p228 = pneg %p227
      $region38: #{tpu_custom_call.1} parent=5 // pred_check_branch
        %230 = sbr.rel (%p228) target = $region40
      $region39: #{tpu_custom_call.1} parent=5 // pred_region
        // Predicated region
        $region41: #{tpu_custom_call.1} parent=39 // pred_check
          %p231 = pneg %p36
        $region42: #{tpu_custom_call.1} parent=39 // pred_check_branch
          %233 = sbr.rel (%p231) target = $region44
        $region43: #{tpu_custom_call.1} parent=39 // pred_region
          %p234 = scmp.lt.s32.totalorder %s16, 1
          %s235 = scalar_select %p234, %s16, 1
          %s236 = scalar_lea.vmem %s0, %s235
        $region44: #{tpu_custom_call.1} parent=39 // pred_fallthru
          _
      $region40: #{tpu_custom_call.1} parent=5 // pred_fallthru
        _
      %p237 = scmp.le.s32.totalorder 1, %s16
      %p238 = scmp.lt.s32.totalorder %s16, 3
      %p239 = pnand %p237, %p238
      %p240 = pneg %p239
      // Predicated region
      $region45: #{tpu_custom_call.1} parent=5 // pred_check
        _
      $region46: #{tpu_custom_call.1} parent=5 // pred_check_branch
        %242 = sbr.rel (%p239) target = $region48
      $region47: #{tpu_custom_call.1} parent=5 // pred_region
        %s243 = ssub.s32 %s16, 1
        %p244 = scmp.lt.s32.totalorder %s21, 1
        %s245 = scalar_select %p244, %s21, 1
        %s246 = scalar_lea.vmem %s0, %s245
        %p247 = pneg %p42
        %p248 = pneg %p39
        %p249 = pneg %p63
        %p250 = pneg %p60
        %p251 = pneg %p84
        %p252 = pneg %p81
        %p253 = pneg %p105
        %p254 = pneg %p102
        %p255 = pneg %p126
        %p256 = pneg %p123
        %p257 = pneg %p147
        %p258 = pneg %p144
        %p259 = pneg %p168
        %p260 = pneg %p165
        %p261 = pneg %p194
        %p262 = pneg %p191
        %s263 = sand.u32 %s181, 1
        %s264 = scalar_lea.sflag [#allocation3], %s263
        %s265 = sand.u32 %s181, 1
        %s266 = smul.addr %s265, 8
        %s267 = scalar_lea.vmem [#allocation2], %s266
        %p268 = scmp.lt.s32.totalorder %s21, 1
        %s269 = scalar_select %p268, %s21, 1
        %s270 = scalar_lea.vmem %s0, %s269
        %v271 = vld [vmem:[%s1] sm:$0xff]
        %v272 = vld [vmem:[%s1 + $0x8] sm:$0xff]
        %v273 = vld [vmem:[%s1 + $0x10] sm:$0xff]
        %v274 = vld [vmem:[%s1 + $0x18] sm:$0xff]
        %v275 = vld [vmem:[%s270] sm:$0x1]
        %277 = vset.pattern.permute.xlu0 0
        %278 = vperm.xlu0 %277, %v271
        %v279 = vpop.permute.xlu0 %278
        %282 = vset.pattern.permute.xlu0 0
        %283 = vperm.xlu0 %282, %v272
        %v284 = vpop.permute.xlu0 %283
        %287 = vset.pattern.permute.xlu0 0
        %288 = vperm.xlu0 %287, %v273
        %v289 = vpop.permute.xlu0 %288
        %292 = vset.pattern.permute.xlu0 0
        %293 = vperm.xlu0 %292, %v274
        %v294 = vpop.permute.xlu0 %293
        %v297 = vlaneseq
        %v298 = vshrl.u32 %v297, 7
        %v299 = vsub.s32 0, %v298
        %v300 = vrot.slane %v275, %v299
        %v302 = vmul.f32 %v279, %v300
        %v303 = vmul.f32 %v284, %v300
        %v304 = vmul.f32 %v289, %v300
        %v305 = vmul.f32 %v294, %v300
        %v306 = vld [vmem:[%s2] sm:$0xff]
        %v307 = vld [vmem:[%s2 + $0x8] sm:$0xff]
        %v308 = vld [vmem:[%s2 + $0x10] sm:$0xff]
        %v309 = vld [vmem:[%s2 + $0x18] sm:$0xff]
        %311 = vset.pattern.permute.xlu0 0
        %312 = vperm.xlu0 %311, %v306
        %v313 = vpop.permute.xlu0 %312
        %316 = vset.pattern.permute.xlu0 0
        %317 = vperm.xlu0 %316, %v307
        %v318 = vpop.permute.xlu0 %317
        %321 = vset.pattern.permute.xlu0 0
        %322 = vperm.xlu0 %321, %v308
        %v323 = vpop.permute.xlu0 %322
        %326 = vset.pattern.permute.xlu0 0
        %327 = vperm.xlu0 %326, %v309
        %v328 = vpop.permute.xlu0 %327
        %v330 = vadd.f32 %v302, %v313
        %v331 = vadd.f32 %v303, %v318
        %v332 = vadd.f32 %v304, %v323
        %v333 = vadd.f32 %v305, %v328
        %v334 = vmax.f32 %v330, 0.0
        %v335 = vmax.f32 %v331, 0.0
        %v336 = vmax.f32 %v332, 0.0
        %v337 = vmax.f32 %v333, 0.0
        %v338 = vld [vmem:[%s3] sm:$0xff]
        %v339 = vld [vmem:[%s3 + $0x8] sm:$0xff]
        %v340 = vld [vmem:[%s3 + $0x10] sm:$0xff]
        %v341 = vld [vmem:[%s3 + $0x18] sm:$0xff]
        %v342 = vld [vmem:[%s4] sm:$0xff]
        %v343 = vld [vmem:[%s4 + $0x8] sm:$0xff]
        %v344 = vld [vmem:[%s4 + $0x10] sm:$0xff]
        %v345 = vld [vmem:[%s4 + $0x18] sm:$0xff]
        %347 = vset.pattern.permute.xlu0 0
        %348 = vperm.xlu0 %347, %v342
        %v349 = vpop.permute.xlu0 %348
        %352 = vset.pattern.permute.xlu0 0
        %353 = vperm.xlu0 %352, %v343
        %v354 = vpop.permute.xlu0 %353
        %357 = vset.pattern.permute.xlu0 0
        %358 = vperm.xlu0 %357, %v344
        %v359 = vpop.permute.xlu0 %358
        %362 = vset.pattern.permute.xlu0 0
        %363 = vperm.xlu0 %362, %v345
        %v364 = vpop.permute.xlu0 %363
        %vm366 = vcmask 261120
        %v368 = vsel %vm366, %v338, 0
        %v371 = vsel %vm366, %v339, 0
        %v374 = vsel %vm366, %v340, 0
        %v377 = vsel %vm366, %v341, 0
        %379 = vmatprep.subr.mxu0 0.0
        %380 = vmatpush1.msra.mxu0 %v334
        %381 = vmatprep.subr.mxu0 0.0
        %382 = vmatpush1.msra.mxu0 %v335
        %383 = vmatprep.subr.mxu0 0.0
        %384 = vmatpush1.msra.mxu0 %v336
        %385 = vmatprep.subr.mxu0 0.0
        %386 = vmatpush1.msra.mxu0 %v337
        %387 = vmatprep.subr.mxu0 0.0
        %388 = vmatpush1.msra.mxu0 0.0
        %389 = vmatprep.subr.mxu0 0.0
        %390 = vmatpush1.msra.mxu0 0.0
        %391 = vmatprep.subr.mxu0 0.0
        %392 = vmatpush1.msra.mxu0 0.0
        %393 = vmatprep.subr.mxu0 0.0
        %394 = vmatpush1.msra.mxu0 0.0
        %395 = vmatprep.subr.mxu0 0.0
        %396 = vmatpush1.msra.mxu0 0.0
        %397 = vmatprep.subr.mxu0 0.0
        %398 = vmatpush1.msra.mxu0 0.0
        %399 = vmatprep.subr.mxu0 0.0
        %400 = vmatpush1.msra.mxu0 0.0
        %401 = vmatprep.subr.mxu0 0.0
        %402 = vmatpush1.msra.mxu0 0.0
        %403 = vmatprep.subr.mxu0 0.0
        %404 = vmatpush1.msra.mxu0 0.0
        %405 = vmatprep.subr.mxu0 0.0
        %406 = vmatpush1.msra.mxu0 0.0
        %407 = vmatprep.subr.mxu0 0.0
        %408 = vmatpush1.msra.mxu0 0.0
        %409 = vmatprep.subr.mxu0 0.0
        %410 = vmatpush1.msra.mxu0 0.0
        %411 = vmatprep.subr.mxu0 0.0
        %412 = vmatpush1.msra.mxu0 0.0
        %413 = vmatprep.subr.mxu0 0.0
        %414 = vmatpush1.msra.mxu0 0.0
        %415 = vmatprep.subr.mxu0 0.0
        %416 = vmatpush1.msra.mxu0 0.0
        %417 = vmatprep.subr.mxu0 0.0
        %418 = vmatpush1.msra.mxu0 0.0
        %419 = vmatprep.subr.mxu0 0.0
        %420 = vmatpush1.msra.mxu0 0.0
        %421 = vmatprep.subr.mxu0 0.0
        %422 = vmatpush1.msra.mxu0 0.0
        %423 = vmatprep.subr.mxu0 0.0
        %424 = vmatpush1.msra.mxu0 0.0
        %425 = vmatprep.subr.mxu0 0.0
        %426 = vmatpush1.msra.mxu0 0.0
        %427 = vmatprep.subr.mxu0 0.0
        %428 = vmatpush1.msra.mxu0 0.0
        %429 = vmatprep.subr.mxu0 0.0
        %430 = vmatpush1.msra.mxu0 0.0
        %431 = vmatprep.subr.mxu0 0.0
        %432 = vmatpush1.msra.mxu0 0.0
        %433 = vmatprep.subr.mxu0 0.0
        %434 = vmatpush1.msra.mxu0 0.0
        %435 = vmatprep.subr.mxu0 0.0
        %436 = vmatpush1.msra.mxu0 0.0
        %437 = vmatprep.subr.mxu0 0.0
        %438 = vmatpush1.msra.mxu0 0.0
        %439 = vmatprep.subr.mxu0 0.0
        %440 = vmatpush1.msra.mxu0 0.0
        %441 = vmatprep.subr.mxu0 0.0
        %442 = vmatpush1.msra.mxu0 0.0
        %443 = vmatprep.mubr.f32.mxu0 0.0
        %444 = vmatmul.mubr.f32.gmra.mrb[0].mxu0 %v368
        %v445 = vpop.f32.mrb[0].mxu0
        %v446 = vadd.f32 %v349, %v445
        %v447 = vpop.f32.mrb[0].mxu0
        %448 = vmatprep.mubr.f32.mxu0 0.0
        %449 = vmatmul.mubr.f32.gmra.mrb[0].mxu0 %v371
        %v450 = vpop.f32.mrb[0].mxu0
        %v451 = vadd.f32 %v354, %v450
        %v452 = vpop.f32.mrb[0].mxu0
        %453 = vmatprep.mubr.f32.mxu0 0.0
        %454 = vmatmul.mubr.f32.gmra.mrb[0].mxu0 %v374
        %v455 = vpop.f32.mrb[0].mxu0
        %v456 = vadd.f32 %v359, %v455
        %v457 = vpop.f32.mrb[0].mxu0
        %458 = vmatprep.mubr.f32.mxu0 0.0
        %459 = vmatmul.mubr.f32.gmra.mrb[0].mxu0 %v377
        %v460 = vpop.f32.mrb[0].mxu0
        %v461 = vadd.f32 %v364, %v460
        %v462 = vpop.f32.mrb[0].mxu0
        %463 = vdwg.mxu0
        %v464 = vmax.f32 %v446, 0.0
        %v465 = vmax.f32 %v451, 0.0
        %v466 = vmax.f32 %v456, 0.0
        %v467 = vmax.f32 %v461, 0.0
        %v468 = vld [vmem:[%s5] sm:$0xff]
        %v469 = vld [vmem:[%s6] sm:$0xff]
        %471 = vset.pattern.permute.xlu0 0
        %472 = vperm.xlu0 %471, %v469
        %v473 = vpop.permute.xlu0 %472
        %v476 = vsel %vm366, %v468, 0
        %478 = vmatprep.subr.mxu0 0.0
        %479 = vmatpush1.msra.mxu0 %v464
        %480 = vmatprep.subr.mxu0 0.0
        %481 = vmatpush1.msra.mxu0 %v465
        %482 = vmatprep.subr.mxu0 0.0
        %483 = vmatpush1.msra.mxu0 %v466
        %484 = vmatprep.subr.mxu0 0.0
        %485 = vmatpush1.msra.mxu0 %v467
        %486 = vmatprep.subr.mxu0 0.0
        %487 = vmatpush1.msra.mxu0 0.0
        %488 = vmatprep.subr.mxu0 0.0
        %489 = vmatpush1.msra.mxu0 0.0
        %490 = vmatprep.subr.mxu0 0.0
        %491 = vmatpush1.msra.mxu0 0.0
        %492 = vmatprep.subr.mxu0 0.0
        %493 = vmatpush1.msra.mxu0 0.0
        %494 = vmatprep.subr.mxu0 0.0
        %495 = vmatpush1.msra.mxu0 0.0
        %496 = vmatprep.subr.mxu0 0.0
        %497 = vmatpush1.msra.mxu0 0.0
        %498 = vmatprep.subr.mxu0 0.0
        %499 = vmatpush1.msra.mxu0 0.0
        %500 = vmatprep.subr.mxu0 0.0
        %501 = vmatpush1.msra.mxu0 0.0
        %502 = vmatprep.subr.mxu0 0.0
        %503 = vmatpush1.msra.mxu0 0.0
        %504 = vmatprep.subr.mxu0 0.0
        %505 = vmatpush1.msra.mxu0 0.0
        %506 = vmatprep.subr.mxu0 0.0
        %507 = vmatpush1.msra.mxu0 0.0
        %508 = vmatprep.subr.mxu0 0.0
        %509 = vmatpush1.msra.mxu0 0.0
        %510 = vmatprep.subr.mxu0 0.0
        %511 = vmatpush1.msra.mxu0 0.0
        %512 = vmatprep.subr.mxu0 0.0
        %513 = vmatpush1.msra.mxu0 0.0
        %514 = vmatprep.subr.mxu0 0.0
        %515 = vmatpush1.msra.mxu0 0.0
        %516 = vmatprep.subr.mxu0 0.0
        %517 = vmatpush1.msra.mxu0 0.0
        %518 = vmatprep.subr.mxu0 0.0
        %519 = vmatpush1.msra.mxu0 0.0
        %520 = vmatprep.subr.mxu0 0.0
        %521 = vmatpush1.msra.mxu0 0.0
        %522 = vmatprep.subr.mxu0 0.0
        %523 = vmatpush1.msra.mxu0 0.0
        %524 = vmatprep.subr.mxu0 0.0
        %525 = vmatpush1.msra.mxu0 0.0
        %526 = vmatprep.subr.mxu0 0.0
        %527 = vmatpush1.msra.mxu0 0.0
        %528 = vmatprep.subr.mxu0 0.0
        %529 = vmatpush1.msra.mxu0 0.0
        %530 = vmatprep.subr.mxu0 0.0
        %531 = vmatpush1.msra.mxu0 0.0
        %532 = vmatprep.subr.mxu0 0.0
        %533 = vmatpush1.msra.mxu0 0.0
        %534 = vmatprep.subr.mxu0 0.0
        %535 = vmatpush1.msra.mxu0 0.0
        %536 = vmatprep.subr.mxu0 0.0
        %537 = vmatpush1.msra.mxu0 0.0
        %538 = vmatprep.subr.mxu0 0.0
        %539 = vmatpush1.msra.mxu0 0.0
        %540 = vmatprep.subr.mxu0 0.0
        %541 = vmatpush1.msra.mxu0 0.0
        %542 = vmatprep.mubr.f32.mxu0 0.0
        %543 = vmatmul.mubr.f32.gmra.mrb[0].mxu0 %v476
        %v544 = vpop.f32.mrb[0].mxu0
        %v545 = vadd.f32 %v473, %v544
        %v546 = vpop.f32.mrb[0].mxu0
        %547 = vdwg.mxu0
        %548 = vst [vmem:[%s267] sm:$0xff] %v545
        %s549 = sand.u32 %s181, 1
        %s550 = scalar_lea.sflag [#allocation3], %s549
        %s551 = sand.u32 %s181, 1
        %s552 = smul.addr %s551, 8
        %s553 = scalar_lea.vmem [#allocation2], %s552
        // Predicated region
        $region49: #{tpu_custom_call.1} parent=47 // pred_check
          %p554 = pneg %p191
        $region50: #{tpu_custom_call.1} parent=47 // pred_check_branch
          %556 = sbr.rel (%p554) target = $region52
        $region51: #{tpu_custom_call.1} parent=47 // pred_region
          %s558 = ssub.s32 128, 128
          %559 = vsyncadd %s550, %s558
          %s560 = smul.addr %s21, 128
          %s561 = scalar_lea.hbm %s7, %s560
          %s563 = sshll.u32 %s553, 4
          %s564 = int_to_ptr.vmem [resolvable:$true] %s563
          %566 = dma.vmem_to_hbm [thread:$0]  %s564, 128, %s561, %s550
        $region52: #{tpu_custom_call.1} parent=47 // pred_fallthru
          _
      $region48: #{tpu_custom_call.1} parent=5 // pred_fallthru
        _
      %p567 = scmp.le.s32.totalorder 2, %s16
      // Predicated region
      $region53: #{tpu_custom_call.1} parent=5 // pred_check
        %p568 = pneg %p567
      $region54: #{tpu_custom_call.1} parent=5 // pred_check_branch
        %570 = sbr.rel (%p568) target = $region56
      $region55: #{tpu_custom_call.1} parent=5 // pred_region
        %s571 = ssub.s32 %s16, 2
        // Predicated region
        $region57: #{tpu_custom_call.1} parent=55 // pred_check
          %p572 = pneg %p197
        $region58: #{tpu_custom_call.1} parent=55 // pred_check_branch
          %574 = sbr.rel (%p572) target = $region60
        $region59: #{tpu_custom_call.1} parent=55 // pred_region
          %s575 = sand.u32 %s182, 1
          %s576 = scalar_lea.sflag [#allocation3], %s575
          %s577 = sand.u32 %s182, 1
          %s578 = smul.addr %s577, 8
          %s579 = scalar_lea.vmem [#allocation2], %s578
          %580 = dma.done %s576, 128
        $region60: #{tpu_custom_call.1} parent=55 // pred_fallthru
          _
      $region56: #{tpu_custom_call.1} parent=5 // pred_fallthru
        _
    $region6: #{tpu_custom_call.1} parent=1 // loop_footer
      %s20 = sadd.s32 1, %s16
    $region7: #{tpu_custom_call.1} parent=1 // loop_footer_branch
      %15 = sbr.rel target = $region3
    $region8: #{tpu_custom_call.1} parent=1 // loop_exit
      _
    %581 = vsyncpa [#allocation3], 1
    %s582 = scalar_lea.sflag [#allocation3], 1
    %583 = vsyncpa %s582, 1

</llo_original>
